<compile_context>
chip_gen: v6e
topology: v6e:2x2x1
jax: 0.10.0
libtpu: 0.0.40
codegen_flags: <defaults>
</compile_context>

<pallas_src>
import jax
import jax.numpy as jnp
from jax.experimental import pallas as pl
from jax.experimental.pallas import tpu as pltpu

_MIB = 1024 * 1024
_TARGET_BLOCK_BYTES = 8 * _MIB  # per-block tile size target (dtype-independent)


def _mul_kernel(w_ref, x_ref, o_ref):
    # w_ref: (1,) float32 scalar in SMEM; x_ref / o_ref: (tile_r, lanes) VMEM tiles.
    o_ref[...] = (x_ref[...] * w_ref[0]).astype(o_ref.dtype)


def _vmem_limit_bytes() -> int:
    """Generation-aware scoped-VMEM limit with headroom for compiler scratch."""
    cap = None
    try:
        cap = getattr(pltpu.get_tpu_info(), "vmem_capacity_bytes", None)
    except Exception:
        cap = None
    if not cap:
        cap = 64 * _MIB  # conservative default: v7x physical per-TC
    limit = min(int(cap) - 16 * _MIB, 64 * _MIB)
    return max(limit, 40 * _MIB)


def mul_forward(x: jax.Array, weight) -> jax.Array:
    """Elementwise x * weight via a tiled, lane-dense Pallas TPU kernel."""
    orig_shape = x.shape
    out_dtype = jnp.result_type(x.dtype, weight)  # PyTorch-like promotion for int * float
    total = int(x.size)
    if total == 0:
        return (x * weight).astype(out_dtype).reshape(orig_shape)

    flat = x.reshape(-1)

    # Widest lane count (multiple of 128) that exactly divides the element count;
    # otherwise use 128 lanes for the bulk and a small jnp tail (no full-array pad).
    lanes = None
    for cand in (1024, 512, 256, 128):
        if total >= cand and total % cand == 0:
            lanes = cand
            break
    if lanes is None:
        lanes = 128

    bulk = (total // lanes) * lanes
    tail = total - bulk

    if bulk == 0:
        # Fewer than 128 elements: a kernel launch is pure overhead.
        return (flat * weight).astype(out_dtype).reshape(orig_shape)

    rows = bulk // lanes
    x2d = (flat[:bulk] if tail else flat).reshape(rows, lanes)

    itemsize = jnp.dtype(x.dtype).itemsize
    sub = 8 * max(1, 4 // itemsize)  # sublane quantum: 8 (f32) / 16 (bf16) / 32 (i8)
    target_rows = max(sub, (_TARGET_BLOCK_BYTES // (lanes * itemsize)) // sub * sub)

    if rows <= 2 * sub:
        # Tiny slab: take it whole (block shape == full array dims is allowed).
        tile_r = rows
    elif rows <= target_rows:
        # Mid-size slab: force >= 2 grid steps so both v7x TensorCores participate.
        half = (rows + 1) // 2
        tile_r = -(-half // sub) * sub
    else:
        tile_r = target_rows

    grid = (pl.cdiv(rows, tile_r),)

    w = jnp.asarray([weight], dtype=jnp.float32)

    cost = pl.CostEstimate(
        flops=bulk,
        transcendentals=0,
        bytes_accessed=bulk * itemsize + bulk * jnp.dtype(out_dtype).itemsize,
    )

    out2d = pl.pallas_call(
        _mul_kernel,
        out_shape=jax.ShapeDtypeStruct((rows, lanes), out_dtype),
        grid=grid,
        in_specs=[
            pl.BlockSpec(memory_space=pltpu.MemorySpace.SMEM),   # scalar weight
            pl.BlockSpec((tile_r, lanes), lambda i: (i, 0)),
        ],
        out_specs=pl.BlockSpec((tile_r, lanes), lambda i: (i, 0)),
        compiler_params=pltpu.CompilerParams(
            dimension_semantics=("parallel",),
            vmem_limit_bytes=_vmem_limit_bytes(),
        ),
        cost_estimate=cost,
    )(w, x2d)

    out_flat = out2d.reshape(-1)
    if tail:
        tail_out = (flat[bulk:] * weight).astype(out_dtype)
        out_flat = jnp.concatenate([out_flat, tail_out])
    return out_flat.reshape(orig_shape)


if __name__ == "__main__":
    key = jax.random.PRNGKey(0)
    # Small NCHW input, as a conv-style tensor from resnet.py would be.
    x = jax.random.normal(key, (2, 4, 16, 16), dtype=jnp.float32)
    weight = 0.5  # scalar weight fixed at module construction

    mul = jax.jit(mul_forward)
    out = jax.block_until_ready(mul(x, weight))

    expected = x * weight
    assert out.shape == x.shape and out.dtype == expected.dtype
    assert jnp.allclose(out, expected, atol=1e-6, rtol=1e-6)
    print("KERNEL_OK")
</pallas_src>

<mosaic_0001>
module attributes {stable_mosaic.version = 11 : i64} {
  func.func @_mul_kernel(%arg0: i32, %arg1: memref<1xf32, #tpu.memory_space<smem>>, %arg2: memref<2x1024xf32, #tpu.memory_space<vmem>>, %arg3: memref<2x1024xf32, #tpu.memory_space<vmem>>) attributes {dimension_semantics = [#tpu.dimension_semantics<parallel>], iteration_bounds = array<i64: 1>, scalar_prefetch = 0 : i64, scratch_operands = 0 : i64, tpu.core_type = #tpu.core_type<tc>, window_params = [{transform_indices = @transform_0, window_bounds = array<i64: 1>}, {transform_indices = @transform_1, window_bounds = array<i64: 2, 1024>}, {transform_indices = @transform_2, window_bounds = array<i64: 2, 1024>}]} {
    %c0 = arith.constant 0 : index
    %c0_0 = arith.constant 0 : index
    %0 = vector.load %arg2[%c0, %c0_0] : memref<2x1024xf32, #tpu.memory_space<vmem>>, vector<2x1024xf32>
    %c0_1 = arith.constant 0 : index
    %1 = memref.load %arg1[%c0_1] : memref<1xf32, #tpu.memory_space<smem>>
    %2 = vector.broadcast %1 : f32 to vector<2x1024xf32>
    %3 = arith.mulf %0, %2 : vector<2x1024xf32>
    %c0_2 = arith.constant 0 : index
    %c0_3 = arith.constant 0 : index
    %4 = vector.load %arg3[%c0_2, %c0_3] : memref<2x1024xf32, #tpu.memory_space<vmem>>, vector<2x1024xf32>
    tpu.vector_store %arg3[%c0_2, %c0_3], %3 {strides = array<i32>} : memref<2x1024xf32, #tpu.memory_space<vmem>>, vector<2x1024xf32>,
    return
  }
  func.func @transform_0(%arg0: i32) -> i32 {
    %c0_i32 = arith.constant 0 : i32
    %c0_i32_0 = arith.constant 0 : i32
    return %c0_i32 : i32
  }
  func.func @transform_1(%arg0: i32) -> (i32, i32) {
    %c0_i32 = arith.constant 0 : i32
    %c0_i32_0 = arith.constant 0 : i32
    return %arg0, %c0_i32 : i32, i32
  }
  func.func @transform_2(%arg0: i32) -> (i32, i32) {
    %c0_i32 = arith.constant 0 : i32
    %c0_i32_0 = arith.constant 0 : i32
    return %arg0, %c0_i32 : i32, i32
  }
}

</mosaic_0001>

<llo_original>
// kernel: mul_forward.1
$region0: #{mul_forward.1}
  #allocation0 [shape = 'u32[]', space=smem, size = 0x4, offset = 0x4, fixed_abs, tag = 'smem constant byte address 0x4 - core index']
  #allocation1 [shape = 'u32[144,128]{1,0:T(1,128)}', space=vmem, size = 0x12000, scoped, tag = 'internal scratch']
  #allocation2 [shape = 'f32[1]{0:T(128)S(6)}', space=smem, size = 0x200, scoped, tag = 'scoped memory for mul_forward.1']
  %s0 = inlined_call_operand.<no memory space> [shape: f32[1], index: 0, kind: input, shape index: {}]
  %s1 = inlined_call_operand.vmem [shape: f32[2,1024], index: 1, kind: input, shape index: {}]
  %s2 = inlined_call_operand.vmem [shape: f32[2,1024], index: 2, kind: output, shape index: {}]
  %s3 = sld [smem:[#allocation0]]
  $region18: #{mul_forward.1} parent=0
    _
  %s5 = ssub.s32 1, %s3
  %s6 = scalar_select 0, %s5, %s3
  %7 = sst [smem:[#allocation2]] %s0
  // Predicated region
  $region2: #{mul_forward.1} parent=0 // pred_check
    _
  $region3: #{mul_forward.1} parent=0 // pred_check_branch
    %9 = sbr.rel (0) target = $region5
  $region4: #{mul_forward.1} parent=0 // pred_region
    _
  $region5: #{mul_forward.1} parent=0 // pred_fallthru
    _
  // Predicated region
  $region6: #{mul_forward.1} parent=0 // pred_check
    _
  $region7: #{mul_forward.1} parent=0 // pred_check_branch
    %11 = sbr.rel (0) target = $region9
  $region8: #{mul_forward.1} parent=0 // pred_region
    _
  $region9: #{mul_forward.1} parent=0 // pred_fallthru
    _
  %v12 = vld [vmem:[%s1] sm:$0xff]
  %v13 = vld [vmem:[%s1 + $0x8] sm:$0xff]
  %s14 = sld [smem:[#allocation2]]
  %v15 = vstv %s14
  %v16 = vmul.f32 %v12, %v15
  %v17 = vmul.f32 %v13, %v15
  %18 = vst [vmem:[%s2] sm:$0xff] %v16
  %19 = vst [vmem:[%s2 + $0x8] sm:$0xff] %v17
  // Predicated region
  $region10: #{mul_forward.1} parent=0 // pred_check
    _
  $region11: #{mul_forward.1} parent=0 // pred_check_branch
    %21 = sbr.rel (0) target = $region13
  $region12: #{mul_forward.1} parent=0 // pred_region
    _
  $region13: #{mul_forward.1} parent=0 // pred_fallthru
    _
  // Predicated region
  $region14: #{mul_forward.1} parent=0 // pred_check
    _
  $region15: #{mul_forward.1} parent=0 // pred_check_branch
    %23 = sbr.rel (0) target = $region17
  $region16: #{mul_forward.1} parent=0 // pred_region
    _
  $region17: #{mul_forward.1} parent=0 // pred_fallthru
    _

</llo_original>
